<compile_context>
chip_gen: v7x
topology: tpu7x:2x2x1
jax: 0.10.0
libtpu: 0.0.40
codegen_flags: <defaults>
</compile_context>

<pallas_src>
import math
import functools

import jax
import jax.numpy as jnp
from jax.experimental import pallas as pl
from jax.experimental.pallas import tpu as pltpu

# ---- hyper-parameters implied by the torch module (hp.REQUEST_NUM etc.) ----
REQUEST_NUM = 3
INPUT_SHAPE = 16
N_ACTIONS = 8
H1, H2, H3 = 32, 64, 64
HEAD_WIDTH = REQUEST_NUM * N_ACTIONS + 1          # 3 policy heads + 1 value = 25
LANE = 128                                        # lane-dense padded width

# Row offsets of each layer's (zero-padded, 128-wide) weight block inside the
# packed weight slab.  All offsets are multiples of 16 (bf16 sublane tile).
W1_R0 = 0
W2_R0 = W1_R0 + INPUT_SHAPE                        # 16
W3_R0 = W2_R0 + LANE                               # 144
WH_R0 = W3_R0 + LANE                               # 272
W_ROWS = WH_R0 + LANE                              # 400


def net_kernel(x_ref, w_ref, b_ref, out_ref):
    """x:(TB,16)f32  w:(400,128)bf16  b:(4,128)f32  out:(TB,128)f32."""
    bf16 = jnp.bfloat16

    # x = relu(input_layer(x))       (real outputs in lanes 0:32, rest zero)
    h = jnp.dot(x_ref[...].astype(bf16), w_ref[W1_R0:W2_R0, :],
                preferred_element_type=jnp.float32) + b_ref[0:1, :]
    h = jnp.maximum(h, 0.0)

    # x = relu(hidden1(x))           (real outputs in lanes 0:64)
    h = jnp.dot(h.astype(bf16), w_ref[W2_R0:W3_R0, :],
                preferred_element_type=jnp.float32) + b_ref[1:2, :]
    h = jnp.maximum(h, 0.0)

    # x = relu(hidden2(x))           (real outputs in lanes 0:64)
    h = jnp.dot(h.astype(bf16), w_ref[W3_R0:WH_R0, :],
                preferred_element_type=jnp.float32) + b_ref[2:3, :]
    h = jnp.maximum(h, 0.0)

    # All 3 policy heads + value head in ONE fused matmul -> (TB, 128) slab
    # (lanes 0:24 = policy logits, lane 24 = V, lanes 25:128 = zero padding).
    heads = (jnp.dot(h.astype(bf16), w_ref[WH_R0:W_ROWS, :],
                     preferred_element_type=jnp.float32) + b_ref[3:4, :])

    # Segmented softmax over lanes [0,8), [8,16), [16,24) done in-place on the
    # full slab with lane-id masks -> no concat / lane shuffles before the store.
    lane = jax.lax.broadcasted_iota(jnp.int32, heads.shape, 1)
    is_policy = lane < REQUEST_NUM * N_ACTIONS

    m_lane = jnp.zeros_like(heads)
    for r in range(REQUEST_NUM):                   # static unroll, R tiny & fixed
        mask = (lane >= r * N_ACTIONS) & (lane < (r + 1) * N_ACTIONS)
        m_r = jnp.max(jnp.where(mask, heads, -jnp.inf), axis=-1, keepdims=True)
        m_lane = jnp.where(mask, m_r, m_lane)

    # Single exp pass; non-policy lanes zeroed before exp so nothing overflows.
    e = jnp.exp(jnp.where(is_policy, heads - m_lane, 0.0))

    d_lane = jnp.ones_like(heads)
    for r in range(REQUEST_NUM):
        mask = (lane >= r * N_ACTIONS) & (lane < (r + 1) * N_ACTIONS)
        d_r = jnp.sum(jnp.where(mask, e, 0.0), axis=-1, keepdims=True)
        d_lane = jnp.where(mask, d_r, d_lane)

    probs = e / d_lane                             # exact divide: rows sum to 1

    # Single full-lane-width store of the whole (TB, 128) result slab.
    out_ref[...] = jnp.where(is_policy, probs, heads)


def pack_params(params):
    """Pack the 10 f32 Linear params into (w_packed (400,128) bf16, b_packed (4,128) f32)."""
    (w1, b1, w2, b2, w3, b3, wpi, bpi, wv, bv) = params

    # Fuse policy heads + value head into one (64, 25) weight / (1, 25) bias.
    w_heads = jnp.concatenate([wpi[r] for r in range(REQUEST_NUM)] + [wv], axis=1)
    b_heads = jnp.concatenate([bpi[r] for r in range(REQUEST_NUM)] + [bv], axis=1)

    def pad_block(a, rows, cols=LANE):
        return jnp.pad(a, ((0, rows - a.shape[0]), (0, cols - a.shape[1])))

    w_packed = jnp.concatenate(
        [pad_block(w1, INPUT_SHAPE),               # (16, 128)
         pad_block(w2, LANE),                      # (128, 128)
         pad_block(w3, LANE),                      # (128, 128)
         pad_block(w_heads, LANE)],                # (128, 128)
        axis=0).astype(jnp.bfloat16)               # (400, 128) = 100 KiB
    b_packed = jnp.concatenate(
        [pad_block(b1, 1), pad_block(b2, 1), pad_block(b3, 1), pad_block(b_heads, 1)],
        axis=0).astype(jnp.float32)                # (4, 128)
    return w_packed, b_packed


def net_forward(x, w_packed, b_packed, *, block_b=None):
    B = x.shape[0]
    if block_b is None:
        # Latency-bound kernel on single-TC v5e/v6e: one grid step is optimal.
        # (Raise to multiple blocks / CORE_PARALLEL only for very large B on v7x.)
        block_b = B
    assert B % block_b == 0 and (block_b == B or block_b % 8 == 0)
    grid = (B // block_b,)

    flops = 2 * B * (INPUT_SHAPE * LANE + 3 * LANE * LANE)
    bytes_accessed = (B * (INPUT_SHAPE + LANE) * 4
                      + w_packed.size * 2 + b_packed.size * 4)
    cost = pl.CostEstimate(flops=flops, transcendentals=B * LANE,
                           bytes_accessed=bytes_accessed)

    out = pl.pallas_call(
        net_kernel,
        out_shape=jax.ShapeDtypeStruct((B, LANE), jnp.float32),
        grid=grid,
        in_specs=[
            pl.BlockSpec((block_b, INPUT_SHAPE), lambda i: (i, 0)),   # x tile
            pl.BlockSpec((W_ROWS, LANE), lambda i: (0, 0)),           # packed weights
            pl.BlockSpec((4, LANE), lambda i: (0, 0)),                # packed biases
        ],
        out_specs=pl.BlockSpec((block_b, LANE), lambda i: (i, 0)),
        compiler_params=pltpu.CompilerParams(
            dimension_semantics=("arbitrary",) if grid[0] == 1 else ("parallel",)),
        cost_estimate=cost,
    )(x, w_packed, b_packed)

    # Re-slice the fused 128-wide output slab into the torch-style (list_of_pi, V).
    pi = [out[:, r * N_ACTIONS:(r + 1) * N_ACTIONS] for r in range(REQUEST_NUM)]
    v = out[:, REQUEST_NUM * N_ACTIONS:HEAD_WIDTH]
    return pi, v


def init_params(key):
    """Deterministic init mimicking torch.nn.Linear default U(-1/sqrt(fan_in), +)."""
    def linear(key, fan_in, fan_out):
        k_w, k_b = jax.random.split(key)
        bound = 1.0 / math.sqrt(fan_in)
        w = jax.random.uniform(k_w, (fan_in, fan_out), jnp.float32, -bound, bound)
        b = jax.random.uniform(k_b, (1, fan_out), jnp.float32, -bound, bound)
        return w, b

    keys = jax.random.split(key, 4 + REQUEST_NUM)
    w1, b1 = linear(keys[0], INPUT_SHAPE, H1)
    w2, b2 = linear(keys[1], H1, H2)
    w3, b3 = linear(keys[2], H2, H3)
    wv, bv = linear(keys[3], H3, 1)

    wpi_list, bpi_list = [], []
    for r in range(REQUEST_NUM):
        w, b = linear(keys[4 + r], H3, N_ACTIONS)
        wpi_list.append(w)
        bpi_list.append(b)
    wpi = jnp.stack(wpi_list, axis=0)              # (R, 64, A)
    bpi = jnp.stack(bpi_list, axis=0)              # (R, 1, A)

    return (w1, b1, w2, b2, w3, b3, wpi, bpi, wv, bv)


def reference_forward(x, params):
    """Pure-JAX f32 reference (mirrors the torch module exactly)."""
    (w1, b1, w2, b2, w3, b3, wpi, bpi, wv, bv) = params
    h = jax.nn.relu(x @ w1 + b1)
    h = jax.nn.relu(h @ w2 + b2)
    h = jax.nn.relu(h @ w3 + b3)
    pi = [jax.nn.softmax(h @ wpi[r] + bpi[r], axis=1) for r in range(REQUEST_NUM)]
    v = h @ wv + bv
    return pi, v


if __name__ == "__main__":
    BATCH = 128        # small data-wise (~72 KiB total traffic), one grid step

    key = jax.random.PRNGKey(0)
    k_params, k_x = jax.random.split(key)

    params = init_params(k_params)
    w_packed, b_packed = pack_params(params)
    x = jax.random.normal(k_x, (BATCH, INPUT_SHAPE), jnp.float32)

    fwd = jax.jit(functools.partial(net_forward))
    pi, v = fwd(x, w_packed, b_packed)
    jax.block_until_ready(v)
    for p in pi:
        jax.block_until_ready(p)

    # Sanity check vs pure-f32 reference (kernel uses bf16 matmul operands,
    # so tolerance is relaxed; softmax divide is exact, so rows sum to 1).
    pi_ref, v_ref = reference_forward(x, params)
    for p, pr in zip(pi, pi_ref):
        assert p.shape == (BATCH, N_ACTIONS)
        assert jnp.allclose(p, pr, atol=2e-2, rtol=2e-2), "policy head mismatch"
        assert jnp.allclose(jnp.sum(p, axis=1), 1.0, atol=1e-3), "softmax not normalized"
    assert v.shape == (BATCH, 1)
    assert jnp.allclose(v, v_ref, atol=2e-2, rtol=2e-2), "value head mismatch"

    print("KERNEL_OK")
</pallas_src>

<mosaic_0001>
module attributes {stable_mosaic.version = 11 : i64} {
  func.func @net_kernel(%arg0: i32, %arg1: memref<128x16xf32, #tpu.memory_space<vmem>>, %arg2: memref<400x128xbf16, #tpu.memory_space<vmem>>, %arg3: memref<4x128xf32, #tpu.memory_space<vmem>>, %arg4: memref<128x128xf32, #tpu.memory_space<vmem>>) attributes {dimension_semantics = [#tpu.dimension_semantics<arbitrary>], iteration_bounds = array<i64: 1>, scalar_prefetch = 0 : i64, scratch_operands = 0 : i64, tpu.core_type = #tpu.core_type<tc>, window_params = [{transform_indices = @transform_0, window_bounds = array<i64: 128, 16>}, {pipeline_mode = #tpu.pipeline_mode<synchronous>, transform_indices = @transform_1, window_bounds = array<i64: 400, 128>}, {pipeline_mode = #tpu.pipeline_mode<synchronous>, transform_indices = @transform_2, window_bounds = array<i64: 4, 128>}, {transform_indices = @transform_3, window_bounds = array<i64: 128, 128>}]} {
    %c0 = arith.constant 0 : index
    %c0_0 = arith.constant 0 : index
    %0 = vector.load %arg1[%c0, %c0_0] : memref<128x16xf32, #tpu.memory_space<vmem>>, vector<128x16xf32>
    %1 = arith.truncf %0 : vector<128x16xf32> to vector<128x16xbf16>
    %c0_1 = arith.constant 0 : index
    %c0_2 = arith.constant 0 : index
    %2 = vector.load %arg2[%c0_1, %c0_2] : memref<400x128xbf16, #tpu.memory_space<vmem>>, vector<16x128xbf16>
    %cst = arith.constant dense<0.000000e+00> : vector<128x128xf32>
    %3 = tpu.matmul %1, %2, %cst {dimension_numbers = #tpu.dot_dimension_numbers<[1], [0], [0], [1], [0, 0, 1, 1], [], []>} : vector<128x16xbf16>, vector<16x128xbf16>, vector<128x128xf32> -> vector<128x128xf32>
    %c0_3 = arith.constant 0 : index
    %c0_4 = arith.constant 0 : index
    %4 = vector.load %arg3[%c0_3, %c0_4] : memref<4x128xf32, #tpu.memory_space<vmem>>, vector<1x128xf32>
    %5 = vector.broadcast %4 : vector<1x128xf32> to vector<128x128xf32>
    %6 = arith.addf %3, %5 : vector<128x128xf32>
    %cst_5 = arith.constant 0.000000e+00 : f32
    %7 = vector.broadcast %cst_5 : f32 to vector<128x128xf32>
    %8 = arith.maximumf %6, %7 : vector<128x128xf32>
    %9 = arith.truncf %8 : vector<128x128xf32> to vector<128x128xbf16>
    %c16 = arith.constant 16 : index
    %c0_6 = arith.constant 0 : index
    %10 = vector.load %arg2[%c16, %c0_6] : memref<400x128xbf16, #tpu.memory_space<vmem>>, vector<128x128xbf16>
    %cst_7 = arith.constant dense<0.000000e+00> : vector<128x128xf32>
    %11 = tpu.matmul %9, %10, %cst_7 {dimension_numbers = #tpu.dot_dimension_numbers<[1], [0], [0], [1], [0, 0, 1, 1], [], []>} : vector<128x128xbf16>, vector<128x128xbf16>, vector<128x128xf32> -> vector<128x128xf32>
    %c1 = arith.constant 1 : index
    %c0_8 = arith.constant 0 : index
    %12 = vector.load %arg3[%c1, %c0_8] : memref<4x128xf32, #tpu.memory_space<vmem>>, vector<1x128xf32>
    %13 = vector.broadcast %12 : vector<1x128xf32> to vector<128x128xf32>
    %14 = arith.addf %11, %13 : vector<128x128xf32>
    %cst_9 = arith.constant 0.000000e+00 : f32
    %15 = vector.broadcast %cst_9 : f32 to vector<128x128xf32>
    %16 = arith.maximumf %14, %15 : vector<128x128xf32>
    %17 = arith.truncf %16 : vector<128x128xf32> to vector<128x128xbf16>
    %c144 = arith.constant 144 : index
    %c0_10 = arith.constant 0 : index
    %18 = vector.load %arg2[%c144, %c0_10] : memref<400x128xbf16, #tpu.memory_space<vmem>>, vector<128x128xbf16>
    %cst_11 = arith.constant dense<0.000000e+00> : vector<128x128xf32>
    %19 = tpu.matmul %17, %18, %cst_11 {dimension_numbers = #tpu.dot_dimension_numbers<[1], [0], [0], [1], [0, 0, 1, 1], [], []>} : vector<128x128xbf16>, vector<128x128xbf16>, vector<128x128xf32> -> vector<128x128xf32>
    %c2 = arith.constant 2 : index
    %c0_12 = arith.constant 0 : index
    %20 = vector.load %arg3[%c2, %c0_12] : memref<4x128xf32, #tpu.memory_space<vmem>>, vector<1x128xf32>
    %21 = vector.broadcast %20 : vector<1x128xf32> to vector<128x128xf32>
    %22 = arith.addf %19, %21 : vector<128x128xf32>
    %cst_13 = arith.constant 0.000000e+00 : f32
    %23 = vector.broadcast %cst_13 : f32 to vector<128x128xf32>
    %24 = arith.maximumf %22, %23 : vector<128x128xf32>
    %25 = arith.truncf %24 : vector<128x128xf32> to vector<128x128xbf16>
    %c272 = arith.constant 272 : index
    %c0_14 = arith.constant 0 : index
    %26 = vector.load %arg2[%c272, %c0_14] : memref<400x128xbf16, #tpu.memory_space<vmem>>, vector<128x128xbf16>
    %cst_15 = arith.constant dense<0.000000e+00> : vector<128x128xf32>
    %27 = tpu.matmul %25, %26, %cst_15 {dimension_numbers = #tpu.dot_dimension_numbers<[1], [0], [0], [1], [0, 0, 1, 1], [], []>} : vector<128x128xbf16>, vector<128x128xbf16>, vector<128x128xf32> -> vector<128x128xf32>
    %c3 = arith.constant 3 : index
    %c0_16 = arith.constant 0 : index
    %28 = vector.load %arg3[%c3, %c0_16] : memref<4x128xf32, #tpu.memory_space<vmem>>, vector<1x128xf32>
    %29 = vector.broadcast %28 : vector<1x128xf32> to vector<128x128xf32>
    %30 = arith.addf %27, %29 : vector<128x128xf32>
    %31 = tpu.iota {dimensions = array<i32: 1>} : vector<128x128xi32>
    %c24_i32 = arith.constant 24 : i32
    %32 = vector.broadcast %c24_i32 : i32 to vector<128x128xi32>
    %33 = arith.cmpi slt, %31, %32 : vector<128x128xi32>
    %cst_17 = arith.constant 0.000000e+00 : f32
    %34 = vector.broadcast %cst_17 : f32 to vector<128x128xf32>
    %c0_i32 = arith.constant 0 : i32
    %35 = vector.broadcast %c0_i32 : i32 to vector<128x128xi32>
    %36 = arith.cmpi sge, %31, %35 : vector<128x128xi32>
    %c8_i32 = arith.constant 8 : i32
    %37 = vector.broadcast %c8_i32 : i32 to vector<128x128xi32>
    %38 = arith.cmpi slt, %31, %37 : vector<128x128xi32>
    %39 = arith.andi %36, %38 : vector<128x128xi1>
    %cst_18 = arith.constant 0xFF800000 : f32
    %40 = vector.broadcast %cst_18 : f32 to vector<128x128xf32>
    %41 = arith.select %39, %30, %40 : vector<128x128xi1>, vector<128x128xf32>
    %cst_19 = arith.constant dense<0xFF800000> : vector<128xf32>
    %42 = vector.multi_reduction <maximumf>, %41, %cst_19 [1] : vector<128x128xf32> to vector<128xf32>
    %43 = vector.shape_cast %42 : vector<128xf32> to vector<128x1xf32>
    %44 = vector.shape_cast %43 : vector<128x1xf32> to vector<128x1xf32>
    %45 = vector.broadcast %44 : vector<128x1xf32> to vector<128x128xf32>
    %46 = arith.select %39, %45, %34 : vector<128x128xi1>, vector<128x128xf32>
    %c8_i32_20 = arith.constant 8 : i32
    %47 = vector.broadcast %c8_i32_20 : i32 to vector<128x128xi32>
    %48 = arith.cmpi sge, %31, %47 : vector<128x128xi32>
    %c16_i32 = arith.constant 16 : i32
    %49 = vector.broadcast %c16_i32 : i32 to vector<128x128xi32>
    %50 = arith.cmpi slt, %31, %49 : vector<128x128xi32>
    %51 = arith.andi %48, %50 : vector<128x128xi1>
    %cst_21 = arith.constant 0xFF800000 : f32
    %52 = vector.broadcast %cst_21 : f32 to vector<128x128xf32>
    %53 = arith.select %51, %30, %52 : vector<128x128xi1>, vector<128x128xf32>
    %cst_22 = arith.constant dense<0xFF800000> : vector<128xf32>
    %54 = vector.multi_reduction <maximumf>, %53, %cst_22 [1] : vector<128x128xf32> to vector<128xf32>
    %55 = vector.shape_cast %54 : vector<128xf32> to vector<128x1xf32>
    %56 = vector.shape_cast %55 : vector<128x1xf32> to vector<128x1xf32>
    %57 = vector.broadcast %56 : vector<128x1xf32> to vector<128x128xf32>
    %58 = arith.select %51, %57, %46 : vector<128x128xi1>, vector<128x128xf32>
    %c16_i32_23 = arith.constant 16 : i32
    %59 = vector.broadcast %c16_i32_23 : i32 to vector<128x128xi32>
    %60 = arith.cmpi sge, %31, %59 : vector<128x128xi32>
    %c24_i32_24 = arith.constant 24 : i32
    %61 = vector.broadcast %c24_i32_24 : i32 to vector<128x128xi32>
    %62 = arith.cmpi slt, %31, %61 : vector<128x128xi32>
    %63 = arith.andi %60, %62 : vector<128x128xi1>
    %cst_25 = arith.constant 0xFF800000 : f32
    %64 = vector.broadcast %cst_25 : f32 to vector<128x128xf32>
    %65 = arith.select %63, %30, %64 : vector<128x128xi1>, vector<128x128xf32>
    %cst_26 = arith.constant dense<0xFF800000> : vector<128xf32>
    %66 = vector.multi_reduction <maximumf>, %65, %cst_26 [1] : vector<128x128xf32> to vector<128xf32>
    %67 = vector.shape_cast %66 : vector<128xf32> to vector<128x1xf32>
    %68 = vector.shape_cast %67 : vector<128x1xf32> to vector<128x1xf32>
    %69 = vector.broadcast %68 : vector<128x1xf32> to vector<128x128xf32>
    %70 = arith.select %63, %69, %58 : vector<128x128xi1>, vector<128x128xf32>
    %71 = arith.subf %30, %70 : vector<128x128xf32>
    %cst_27 = arith.constant 0.000000e+00 : f32
    %72 = vector.broadcast %cst_27 : f32 to vector<128x128xf32>
    %73 = arith.select %33, %71, %72 : vector<128x128xi1>, vector<128x128xf32>
    %74 = math.exp %73 : vector<128x128xf32>
    %cst_28 = arith.constant 1.000000e+00 : f32
    %75 = vector.broadcast %cst_28 : f32 to vector<128x128xf32>
    %c0_i32_29 = arith.constant 0 : i32
    %76 = vector.broadcast %c0_i32_29 : i32 to vector<128x128xi32>
    %77 = arith.cmpi sge, %31, %76 : vector<128x128xi32>
    %c8_i32_30 = arith.constant 8 : i32
    %78 = vector.broadcast %c8_i32_30 : i32 to vector<128x128xi32>
    %79 = arith.cmpi slt, %31, %78 : vector<128x128xi32>
    %80 = arith.andi %77, %79 : vector<128x128xi1>
    %cst_31 = arith.constant 0.000000e+00 : f32
    %81 = vector.broadcast %cst_31 : f32 to vector<128x128xf32>
    %82 = arith.select %80, %74, %81 : vector<128x128xi1>, vector<128x128xf32>
    %cst_32 = arith.constant dense<0.000000e+00> : vector<128xf32>
    %83 = vector.multi_reduction <add>, %82, %cst_32 [1] : vector<128x128xf32> to vector<128xf32>
    %84 = vector.shape_cast %83 : vector<128xf32> to vector<128x1xf32>
    %85 = vector.shape_cast %84 : vector<128x1xf32> to vector<128x1xf32>
    %86 = vector.broadcast %85 : vector<128x1xf32> to vector<128x128xf32>
    %87 = arith.select %80, %86, %75 : vector<128x128xi1>, vector<128x128xf32>
    %c8_i32_33 = arith.constant 8 : i32
    %88 = vector.broadcast %c8_i32_33 : i32 to vector<128x128xi32>
    %89 = arith.cmpi sge, %31, %88 : vector<128x128xi32>
    %c16_i32_34 = arith.constant 16 : i32
    %90 = vector.broadcast %c16_i32_34 : i32 to vector<128x128xi32>
    %91 = arith.cmpi slt, %31, %90 : vector<128x128xi32>
    %92 = arith.andi %89, %91 : vector<128x128xi1>
    %cst_35 = arith.constant 0.000000e+00 : f32
    %93 = vector.broadcast %cst_35 : f32 to vector<128x128xf32>
    %94 = arith.select %92, %74, %93 : vector<128x128xi1>, vector<128x128xf32>
    %cst_36 = arith.constant dense<0.000000e+00> : vector<128xf32>
    %95 = vector.multi_reduction <add>, %94, %cst_36 [1] : vector<128x128xf32> to vector<128xf32>
    %96 = vector.shape_cast %95 : vector<128xf32> to vector<128x1xf32>
    %97 = vector.shape_cast %96 : vector<128x1xf32> to vector<128x1xf32>
    %98 = vector.broadcast %97 : vector<128x1xf32> to vector<128x128xf32>
    %99 = arith.select %92, %98, %87 : vector<128x128xi1>, vector<128x128xf32>
    %c16_i32_37 = arith.constant 16 : i32
    %100 = vector.broadcast %c16_i32_37 : i32 to vector<128x128xi32>
    %101 = arith.cmpi sge, %31, %100 : vector<128x128xi32>
    %c24_i32_38 = arith.constant 24 : i32
    %102 = vector.broadcast %c24_i32_38 : i32 to vector<128x128xi32>
    %103 = arith.cmpi slt, %31, %102 : vector<128x128xi32>
    %104 = arith.andi %101, %103 : vector<128x128xi1>
    %cst_39 = arith.constant 0.000000e+00 : f32
    %105 = vector.broadcast %cst_39 : f32 to vector<128x128xf32>
    %106 = arith.select %104, %74, %105 : vector<128x128xi1>, vector<128x128xf32>
    %cst_40 = arith.constant dense<0.000000e+00> : vector<128xf32>
    %107 = vector.multi_reduction <add>, %106, %cst_40 [1] : vector<128x128xf32> to vector<128xf32>
    %108 = vector.shape_cast %107 : vector<128xf32> to vector<128x1xf32>
    %109 = vector.shape_cast %108 : vector<128x1xf32> to vector<128x1xf32>
    %110 = vector.broadcast %109 : vector<128x1xf32> to vector<128x128xf32>
    %111 = arith.select %104, %110, %99 : vector<128x128xi1>, vector<128x128xf32>
    %112 = arith.divf %74, %111 : vector<128x128xf32>
    %113 = arith.select %33, %112, %30 : vector<128x128xi1>, vector<128x128xf32>
    %c0_41 = arith.constant 0 : index
    %c0_42 = arith.constant 0 : index
    %114 = vector.load %arg4[%c0_41, %c0_42] : memref<128x128xf32, #tpu.memory_space<vmem>>, vector<128x128xf32>
    tpu.vector_store %arg4[%c0_41, %c0_42], %113 {strides = array<i32>} : memref<128x128xf32, #tpu.memory_space<vmem>>, vector<128x128xf32>,
    return
  }
  func.func @transform_0(%arg0: i32) -> (i32, i32) {
    %c0_i32 = arith.constant 0 : i32
    %c0_i32_0 = arith.constant 0 : i32
    return %arg0, %c0_i32 : i32, i32
  }
  func.func @transform_1(%arg0: i32) -> (i32, i32) {
    %c0_i32 = arith.constant 0 : i32
    %c0_i32_0 = arith.constant 0 : i32
    %c0_i32_1 = arith.constant 0 : i32
    return %c0_i32, %c0_i32_0 : i32, i32
  }
  func.func @transform_2(%arg0: i32) -> (i32, i32) {
    %c0_i32 = arith.constant 0 : i32
    %c0_i32_0 = arith.constant 0 : i32
    %c0_i32_1 = arith.constant 0 : i32
    return %c0_i32, %c0_i32_0 : i32, i32
  }
  func.func @transform_3(%arg0: i32) -> (i32, i32) {
    %c0_i32 = arith.constant 0 : i32
    %c0_i32_0 = arith.constant 0 : i32
    return %arg0, %c0_i32 : i32, i32
  }
}

</mosaic_0001>

<llo_original>
// kernel: net_forward.1
$region0: #{net_forward.1}
  #allocation0 [shape = 'u32[]', space=smem, size = 0x4, offset = 0x4, fixed_abs, tag = 'smem constant byte address 0x4 - core index']
  #allocation1 [shape = 'u32[144,128]{1,0:T(1,128)}', space=vmem, size = 0x12000, scoped, tag = 'internal scratch']
  %s0 = inlined_call_operand.vmem [shape: f32[128,16], index: 0, kind: input, shape index: {}]
  %s1 = inlined_call_operand.hbm [shape: bf16[400,128], index: 1, kind: input, shape index: {}]
  %s2 = inlined_call_operand.vmem [shape: f32[4,128], index: 2, kind: input, shape index: {}]
  %s3 = inlined_call_operand.vmem [shape: f32[128,128], index: 3, kind: output, shape index: {}]
  %s4 = sld [smem:[#allocation0]]
  $region26: #{net_forward.1} parent=0
    _
  %s6 = ssub.s32 1, %s4
  %s7 = scalar_select 0, %s6, %s4
  $region1: #{net_forward.1} parent=0
    #allocation2 [shape = 'u8[102400]{0}', space=vmem, size = 0x19000, scoped, tag = 'input window, operand 1, single buffered']
    #allocation3 [shape = 's32[1]{0}', space=sflag, size = 0x4, scoped, tag = 'scoped memory for net_forward.1']
    %8 = vsyncpa [#allocation3], 0
    // Predicated region
    $region2: #{net_forward.1} parent=1 // pred_check
      _
    $region3: #{net_forward.1} parent=1 // pred_check_branch
      %10 = sbr.rel (0) target = $region5
    $region4: #{net_forward.1} parent=1 // pred_region
      _
    $region5: #{net_forward.1} parent=1 // pred_fallthru
      _
    // Predicated region
    $region6: #{net_forward.1} parent=1 // pred_check
      _
    $region7: #{net_forward.1} parent=1 // pred_check_branch
      %12 = sbr.rel (0) target = $region9
    $region8: #{net_forward.1} parent=1 // pred_region
      %s14 = ssub.s32 3200, 3200
      %15 = vsyncadd [#allocation3], %s14
      %s16 = sshll.u32 [#allocation2], 4
      %s17 = int_to_ptr.vmem [resolvable:$true] %s16
      %22 = dma.hbm_to_vmem [thread:$0]  %s1, 3200, %s17, [#allocation3], 64, 64, 4
    $region9: #{net_forward.1} parent=1 // pred_fallthru
      _
    // Predicated region
    $region10: #{net_forward.1} parent=1 // pred_check
      _
    $region11: #{net_forward.1} parent=1 // pred_check_branch
      %24 = sbr.rel (0) target = $region13
    $region12: #{net_forward.1} parent=1 // pred_region
      _
    $region13: #{net_forward.1} parent=1 // pred_fallthru
      _
    // Predicated region
    $region14: #{net_forward.1} parent=1 // pred_check
      _
    $region15: #{net_forward.1} parent=1 // pred_check_branch
      %26 = sbr.rel (0) target = $region17
    $region16: #{net_forward.1} parent=1 // pred_region
      %27 = dma.done [#allocation3], 3200
    $region17: #{net_forward.1} parent=1 // pred_fallthru
      _
    %v29 = vld [vmem:[%s0] sm:$0xff]
    %v30 = vld [vmem:[%s0 + $0x8] sm:$0xff]
    %v31 = vld [vmem:[%s0 + $0x10] sm:$0xff]
    %v32 = vld [vmem:[%s0 + $0x18] sm:$0xff]
    %v33 = vld [vmem:[%s0 + $0x20] sm:$0xff]
    %v34 = vld [vmem:[%s0 + $0x28] sm:$0xff]
    %v35 = vld [vmem:[%s0 + $0x30] sm:$0xff]
    %v36 = vld [vmem:[%s0 + $0x38] sm:$0xff]
    %v37 = vld [vmem:[%s0 + $0x40] sm:$0xff]
    %v38 = vld [vmem:[%s0 + $0x48] sm:$0xff]
    %v39 = vld [vmem:[%s0 + $0x50] sm:$0xff]
    %v40 = vld [vmem:[%s0 + $0x58] sm:$0xff]
    %v41 = vld [vmem:[%s0 + $0x60] sm:$0xff]
    %v42 = vld [vmem:[%s0 + $0x68] sm:$0xff]
    %v43 = vld [vmem:[%s0 + $0x70] sm:$0xff]
    %v44 = vld [vmem:[%s0 + $0x78] sm:$0xff]
    %v45 = vpack.c.bf16 %v30, %v29
    %v46 = vpack.c.bf16 %v32, %v31
    %v47 = vpack.c.bf16 %v34, %v33
    %v48 = vpack.c.bf16 %v36, %v35
    %v49 = vpack.c.bf16 %v38, %v37
    %v50 = vpack.c.bf16 %v40, %v39
    %v51 = vpack.c.bf16 %v42, %v41
    %v52 = vpack.c.bf16 %v44, %v43
    %v53 = vld [vmem:[#allocation2] sm:$0xf]
    %v54 = vld [vmem:[#allocation2 + $0x4] sm:$0xf]
    %v55 = vld [vmem:[%s2] sm:$0x1]
    %v56 = vlaneseq
    %v57 = vshrl.u32 %v56, 7
    %v58 = vsub.s32 0, %v57
    %v59 = vrot.slane %v55, %v58
    %v62 = vunpack.c.l.b16 %v53
    %v63 = vunpack.c.l.b16 %v54
    %v64 = vpack.c.b16 %v63, %v62
    %vm66 = vcmask 130048
    %v68 = vsel %vm66, %v45, 0
    %v71 = vsel %vm66, %v46, 0
    %v74 = vsel %vm66, %v47, 0
    %v77 = vsel %vm66, %v48, 0
    %v80 = vsel %vm66, %v49, 0
    %v83 = vsel %vm66, %v50, 0
    %v86 = vsel %vm66, %v51, 0
    %v89 = vsel %vm66, %v52, 0
    %91 = vmatprep.subr.bf16.mxu0 0
    %92 = vmatpush1.bf16.msra.mxu0 %v64
    %93 = vmatprep.subr.bf16.mxu0 0
    %94 = vmatpush1.bf16.msra.mxu0 0
    %95 = vmatprep.subr.bf16.mxu0 0
    %96 = vmatpush1.bf16.msra.mxu0 0
    %97 = vmatprep.subr.bf16.mxu0 0
    %98 = vmatpush1.bf16.msra.mxu0 0
    %99 = vmatprep.subr.bf16.mxu0 0
    %100 = vmatpush1.bf16.msra.mxu0 0
    %101 = vmatprep.subr.bf16.mxu0 0
    %102 = vmatpush1.bf16.msra.mxu0 0
    %103 = vmatprep.subr.bf16.mxu0 0
    %104 = vmatpush1.bf16.msra.mxu0 0
    %105 = vmatprep.subr.bf16.mxu0 0
    %106 = vmatpush1.bf16.msra.mxu0 0
    %107 = vmatprep.subr.bf16.mxu0 0
    %108 = vmatpush1.bf16.msra.mxu0 0
    %109 = vmatprep.subr.bf16.mxu0 0
    %110 = vmatpush1.bf16.msra.mxu0 0
    %111 = vmatprep.subr.bf16.mxu0 0
    %112 = vmatpush1.bf16.msra.mxu0 0
    %113 = vmatprep.subr.bf16.mxu0 0
    %114 = vmatpush1.bf16.msra.mxu0 0
    %115 = vmatprep.subr.bf16.mxu0 0
    %116 = vmatpush1.bf16.msra.mxu0 0
    %117 = vmatprep.subr.bf16.mxu0 0
    %118 = vmatpush1.bf16.msra.mxu0 0
    %119 = vmatprep.subr.bf16.mxu0 0
    %120 = vmatpush1.bf16.msra.mxu0 0
    %121 = vmatprep.subr.bf16.mxu0 0
    %122 = vmatpush1.bf16.msra.mxu0 0
    %123 = vmatprep.mubr.bf16.mxu0 0
    %124 = vmatmul.mubr.bf16.gmra.mrb[0].mxu0 %v68
    %v125 = vpop.f32.mrb[0].mxu0
    %v126 = vadd.f32 %v59, %v125
    %v127 = vpop.f32.mrb[0].mxu0
    %v128 = vpop.f32.mrb[0].mxu0
    %v129 = vadd.f32 %v59, %v128
    %v130 = vpop.f32.mrb[0].mxu0
    %131 = vmatprep.mubr.bf16.mxu0 0
    %132 = vmatmul.mubr.bf16.gmra.mrb[0].mxu0 %v71
    %v133 = vpop.f32.mrb[0].mxu0
    %v134 = vadd.f32 %v59, %v133
    %v135 = vpop.f32.mrb[0].mxu0
    %v136 = vpop.f32.mrb[0].mxu0
    %v137 = vadd.f32 %v59, %v136
    %v138 = vpop.f32.mrb[0].mxu0
    %139 = vmatprep.mubr.bf16.mxu0 0
    %140 = vmatmul.mubr.bf16.gmra.mrb[0].mxu0 %v74
    %v141 = vpop.f32.mrb[0].mxu0
    %v142 = vadd.f32 %v59, %v141
    %v143 = vpop.f32.mrb[0].mxu0
    %v144 = vpop.f32.mrb[0].mxu0
    %v145 = vadd.f32 %v59, %v144
    %v146 = vpop.f32.mrb[0].mxu0
    %147 = vmatprep.mubr.bf16.mxu0 0
    %148 = vmatmul.mubr.bf16.gmra.mrb[0].mxu0 %v77
    %v149 = vpop.f32.mrb[0].mxu0
    %v150 = vadd.f32 %v59, %v149
    %v151 = vpop.f32.mrb[0].mxu0
    %v152 = vpop.f32.mrb[0].mxu0
    %v153 = vadd.f32 %v59, %v152
    %v154 = vpop.f32.mrb[0].mxu0
    %155 = vmatprep.mubr.bf16.mxu0 0
    %156 = vmatmul.mubr.bf16.gmra.mrb[0].mxu0 %v80
    %v157 = vpop.f32.mrb[0].mxu0
    %v158 = vadd.f32 %v59, %v157
    %v159 = vpop.f32.mrb[0].mxu0
    %v160 = vpop.f32.mrb[0].mxu0
    %v161 = vadd.f32 %v59, %v160
    %v162 = vpop.f32.mrb[0].mxu0
    %163 = vmatprep.mubr.bf16.mxu0 0
    %164 = vmatmul.mubr.bf16.gmra.mrb[0].mxu0 %v83
    %v165 = vpop.f32.mrb[0].mxu0
    %v166 = vadd.f32 %v59, %v165
    %v167 = vpop.f32.mrb[0].mxu0
    %v168 = vpop.f32.mrb[0].mxu0
    %v169 = vadd.f32 %v59, %v168
    %v170 = vpop.f32.mrb[0].mxu0
    %171 = vmatprep.mubr.bf16.mxu0 0
    %172 = vmatmul.mubr.bf16.gmra.mrb[0].mxu0 %v86
    %v173 = vpop.f32.mrb[0].mxu0
    %v174 = vadd.f32 %v59, %v173
    %v175 = vpop.f32.mrb[0].mxu0
    %v176 = vpop.f32.mrb[0].mxu0
    %v177 = vadd.f32 %v59, %v176
    %v178 = vpop.f32.mrb[0].mxu0
    %179 = vmatprep.mubr.bf16.mxu0 0
    %180 = vmatmul.mubr.bf16.gmra.mrb[0].mxu0 %v89
    %v181 = vpop.f32.mrb[0].mxu0
    %v182 = vadd.f32 %v59, %v181
    %v183 = vpop.f32.mrb[0].mxu0
    %v184 = vpop.f32.mrb[0].mxu0
    %v185 = vadd.f32 %v59, %v184
    %v186 = vpop.f32.mrb[0].mxu0
    %187 = vdwg.mxu0
    %v188 = vmax.f32 %v126, 0.0
    %v189 = vmax.f32 %v129, 0.0
    %v190 = vmax.f32 %v134, 0.0
    %v191 = vmax.f32 %v137, 0.0
    %v192 = vmax.f32 %v142, 0.0
    %v193 = vmax.f32 %v145, 0.0
    %v194 = vmax.f32 %v150, 0.0
    %v195 = vmax.f32 %v153, 0.0
    %v196 = vmax.f32 %v158, 0.0
    %v197 = vmax.f32 %v161, 0.0
    %v198 = vmax.f32 %v166, 0.0
    %v199 = vmax.f32 %v169, 0.0
    %v200 = vmax.f32 %v174, 0.0
    %v201 = vmax.f32 %v177, 0.0
    %v202 = vmax.f32 %v182, 0.0
    %v203 = vmax.f32 %v185, 0.0
    %v204 = vpack.c.bf16 %v189, %v188
    %v205 = vpack.c.bf16 %v191, %v190
    %v206 = vpack.c.bf16 %v193, %v192
    %v207 = vpack.c.bf16 %v195, %v194
    %v208 = vpack.c.bf16 %v197, %v196
    %v209 = vpack.c.bf16 %v199, %v198
    %v210 = vpack.c.bf16 %v201, %v200
    %v211 = vpack.c.bf16 %v203, %v202
    %v212 = vld [vmem:[#allocation2 + $0x8] sm:$0xf]
    %v213 = vld [vmem:[#allocation2 + $0xc] sm:$0xf]
    %v214 = vld [vmem:[#allocation2 + $0x10] sm:$0xf]
    %v215 = vld [vmem:[#allocation2 + $0x14] sm:$0xf]
    %v216 = vld [vmem:[#allocation2 + $0x18] sm:$0xf]
    %v217 = vld [vmem:[#allocation2 + $0x1c] sm:$0xf]
    %v218 = vld [vmem:[#allocation2 + $0x20] sm:$0xf]
    %v219 = vld [vmem:[#allocation2 + $0x24] sm:$0xf]
    %v220 = vld [vmem:[#allocation2 + $0x28] sm:$0xf]
    %v221 = vld [vmem:[#allocation2 + $0x2c] sm:$0xf]
    %v222 = vld [vmem:[#allocation2 + $0x30] sm:$0xf]
    %v223 = vld [vmem:[#allocation2 + $0x34] sm:$0xf]
    %v224 = vld [vmem:[#allocation2 + $0x38] sm:$0xf]
    %v225 = vld [vmem:[#allocation2 + $0x3c] sm:$0xf]
    %v226 = vld [vmem:[#allocation2 + $0x40] sm:$0xf]
    %v227 = vld [vmem:[#allocation2 + $0x44] sm:$0xf]
    %v228 = vld [vmem:[%s2 + $0x1] sm:$0x1]
    %v229 = vlaneseq
    %v230 = vshrl.u32 %v229, 7
    %v231 = vsub.s32 0, %v230
    %v232 = vrot.slane %v228, %v231
    %v249 = vunpack.c.l.b16 %v212
    %v250 = vunpack.c.l.b16 %v213
    %v251 = vunpack.c.l.b16 %v214
    %v252 = vunpack.c.l.b16 %v215
    %v253 = vunpack.c.l.b16 %v216
    %v254 = vunpack.c.l.b16 %v217
    %v255 = vunpack.c.l.b16 %v218
    %v256 = vunpack.c.l.b16 %v219
    %v257 = vunpack.c.l.b16 %v220
    %v258 = vunpack.c.l.b16 %v221
    %v259 = vunpack.c.l.b16 %v222
    %v260 = vunpack.c.l.b16 %v223
    %v261 = vunpack.c.l.b16 %v224
    %v262 = vunpack.c.l.b16 %v225
    %v263 = vunpack.c.l.b16 %v226
    %v264 = vunpack.c.l.b16 %v227
    %v265 = vpack.c.b16 %v250, %v249
    %v266 = vpack.c.b16 %v252, %v251
    %v267 = vpack.c.b16 %v254, %v253
    %v268 = vpack.c.b16 %v256, %v255
    %v269 = vpack.c.b16 %v258, %v257
    %v270 = vpack.c.b16 %v260, %v259
    %v271 = vpack.c.b16 %v262, %v261
    %v272 = vpack.c.b16 %v264, %v263
    %281 = vmatprep.subr.bf16.mxu0 0
    %282 = vmatpush1.bf16.msra.mxu0 %v265
    %283 = vmatprep.subr.bf16.mxu0 0
    %284 = vmatpush1.bf16.msra.mxu0 %v266
    %285 = vmatprep.subr.bf16.mxu0 0
    %286 = vmatpush1.bf16.msra.mxu0 %v267
    %287 = vmatprep.subr.bf16.mxu0 0
    %288 = vmatpush1.bf16.msra.mxu0 %v268
    %289 = vmatprep.subr.bf16.mxu0 0
    %290 = vmatpush1.bf16.msra.mxu0 %v269
    %291 = vmatprep.subr.bf16.mxu0 0
    %292 = vmatpush1.bf16.msra.mxu0 %v270
    %293 = vmatprep.subr.bf16.mxu0 0
    %294 = vmatpush1.bf16.msra.mxu0 %v271
    %295 = vmatprep.subr.bf16.mxu0 0
    %296 = vmatpush1.bf16.msra.mxu0 %v272
    %297 = vmatprep.subr.bf16.mxu0 0
    %298 = vmatpush1.bf16.msra.mxu0 0
    %299 = vmatprep.subr.bf16.mxu0 0
    %300 = vmatpush1.bf16.msra.mxu0 0
    %301 = vmatprep.subr.bf16.mxu0 0
    %302 = vmatpush1.bf16.msra.mxu0 0
    %303 = vmatprep.subr.bf16.mxu0 0
    %304 = vmatpush1.bf16.msra.mxu0 0
    %305 = vmatprep.subr.bf16.mxu0 0
    %306 = vmatpush1.bf16.msra.mxu0 0
    %307 = vmatprep.subr.bf16.mxu0 0
    %308 = vmatpush1.bf16.msra.mxu0 0
    %309 = vmatprep.subr.bf16.mxu0 0
    %310 = vmatpush1.bf16.msra.mxu0 0
    %311 = vmatprep.subr.bf16.mxu0 0
    %312 = vmatpush1.bf16.msra.mxu0 0
    %313 = vmatprep.mubr.bf16.mxu0 0
    %314 = vmatmul.mubr.bf16.gmra.mrb[0].mxu0 %v204
    %v315 = vpop.f32.mrb[0].mxu0
    %v316 = vadd.f32 %v232, %v315
    %v317 = vpop.f32.mrb[0].mxu0
    %v318 = vpop.f32.mrb[0].mxu0
    %v319 = vadd.f32 %v232, %v318
    %v320 = vpop.f32.mrb[0].mxu0
    %321 = vmatprep.mubr.bf16.mxu0 0
    %322 = vmatmul.mubr.bf16.gmra.mrb[0].mxu0 %v205
    %v323 = vpop.f32.mrb[0].mxu0
    %v324 = vadd.f32 %v232, %v323
    %v325 = vpop.f32.mrb[0].mxu0
    %v326 = vpop.f32.mrb[0].mxu0
    %v327 = vadd.f32 %v232, %v326
    %v328 = vpop.f32.mrb[0].mxu0
    %329 = vmatprep.mubr.bf16.mxu0 0
    %330 = vmatmul.mubr.bf16.gmra.mrb[0].mxu0 %v206
    %v331 = vpop.f32.mrb[0].mxu0
    %v332 = vadd.f32 %v232, %v331
    %v333 = vpop.f32.mrb[0].mxu0
    %v334 = vpop.f32.mrb[0].mxu0
    %v335 = vadd.f32 %v232, %v334
    %v336 = vpop.f32.mrb[0].mxu0
    %337 = vmatprep.mubr.bf16.mxu0 0
    %338 = vmatmul.mubr.bf16.gmra.mrb[0].mxu0 %v207
    %v339 = vpop.f32.mrb[0].mxu0
    %v340 = vadd.f32 %v232, %v339
    %v341 = vpop.f32.mrb[0].mxu0
    %v342 = vpop.f32.mrb[0].mxu0
    %v343 = vadd.f32 %v232, %v342
    %v344 = vpop.f32.mrb[0].mxu0
    %345 = vmatprep.mubr.bf16.mxu0 0
    %346 = vmatmul.mubr.bf16.gmra.mrb[0].mxu0 %v208
    %v347 = vpop.f32.mrb[0].mxu0
    %v348 = vadd.f32 %v232, %v347
    %v349 = vpop.f32.mrb[0].mxu0
    %v350 = vpop.f32.mrb[0].mxu0
    %v351 = vadd.f32 %v232, %v350
    %v352 = vpop.f32.mrb[0].mxu0
    %353 = vmatprep.mubr.bf16.mxu0 0
    %354 = vmatmul.mubr.bf16.gmra.mrb[0].mxu0 %v209
    %v355 = vpop.f32.mrb[0].mxu0
    %v356 = vadd.f32 %v232, %v355
    %v357 = vpop.f32.mrb[0].mxu0
    %v358 = vpop.f32.mrb[0].mxu0
    %v359 = vadd.f32 %v232, %v358
    %v360 = vpop.f32.mrb[0].mxu0
    %361 = vmatprep.mubr.bf16.mxu0 0
    %362 = vmatmul.mubr.bf16.gmra.mrb[0].mxu0 %v210
    %v363 = vpop.f32.mrb[0].mxu0
    %v364 = vadd.f32 %v232, %v363
    %v365 = vpop.f32.mrb[0].mxu0
    %v366 = vpop.f32.mrb[0].mxu0
    %v367 = vadd.f32 %v232, %v366
    %v368 = vpop.f32.mrb[0].mxu0
    %369 = vmatprep.mubr.bf16.mxu0 0
    %370 = vmatmul.mubr.bf16.gmra.mrb[0].mxu0 %v211
    %v371 = vpop.f32.mrb[0].mxu0
    %v372 = vadd.f32 %v232, %v371
    %v373 = vpop.f32.mrb[0].mxu0
    %v374 = vpop.f32.mrb[0].mxu0
    %v375 = vadd.f32 %v232, %v374
    %v376 = vpop.f32.mrb[0].mxu0
    %377 = vdwg.mxu0
    %v378 = vmax.f32 %v316, 0.0
    %v379 = vmax.f32 %v319, 0.0
    %v380 = vmax.f32 %v324, 0.0
    %v381 = vmax.f32 %v327, 0.0
    %v382 = vmax.f32 %v332, 0.0
    %v383 = vmax.f32 %v335, 0.0
    %v384 = vmax.f32 %v340, 0.0
    %v385 = vmax.f32 %v343, 0.0
    %v386 = vmax.f32 %v348, 0.0
    %v387 = vmax.f32 %v351, 0.0
    %v388 = vmax.f32 %v356, 0.0
    %v389 = vmax.f32 %v359, 0.0
    %v390 = vmax.f32 %v364, 0.0
    %v391 = vmax.f32 %v367, 0.0
    %v392 = vmax.f32 %v372, 0.0
    %v393 = vmax.f32 %v375, 0.0
    %v394 = vpack.c.bf16 %v379, %v378
    %v395 = vpack.c.bf16 %v381, %v380
    %v396 = vpack.c.bf16 %v383, %v382
    %v397 = vpack.c.bf16 %v385, %v384
    %v398 = vpack.c.bf16 %v387, %v386
    %v399 = vpack.c.bf16 %v389, %v388
    %v400 = vpack.c.bf16 %v391, %v390
    %v401 = vpack.c.bf16 %v393, %v392
    %v402 = vld [vmem:[#allocation2 + $0x48] sm:$0xf]
    %v403 = vld [vmem:[#allocation2 + $0x4c] sm:$0xf]
    %v404 = vld [vmem:[#allocation2 + $0x50] sm:$0xf]
    %v405 = vld [vmem:[#allocation2 + $0x54] sm:$0xf]
    %v406 = vld [vmem:[#allocation2 + $0x58] sm:$0xf]
    %v407 = vld [vmem:[#allocation2 + $0x5c] sm:$0xf]
    %v408 = vld [vmem:[#allocation2 + $0x60] sm:$0xf]
    %v409 = vld [vmem:[#allocation2 + $0x64] sm:$0xf]
    %v410 = vld [vmem:[#allocation2 + $0x68] sm:$0xf]
    %v411 = vld [vmem:[#allocation2 + $0x6c] sm:$0xf]
    %v412 = vld [vmem:[#allocation2 + $0x70] sm:$0xf]
    %v413 = vld [vmem:[#allocation2 + $0x74] sm:$0xf]
    %v414 = vld [vmem:[#allocation2 + $0x78] sm:$0xf]
    %v415 = vld [vmem:[#allocation2 + $0x7c] sm:$0xf]
    %v416 = vld [vmem:[#allocation2 + $0x80] sm:$0xf]
    %v417 = vld [vmem:[#allocation2 + $0x84] sm:$0xf]
    %v418 = vld [vmem:[%s2 + $0x2] sm:$0x1]
    %v419 = vlaneseq
    %v420 = vshrl.u32 %v419, 7
    %v421 = vsub.s32 0, %v420
    %v422 = vrot.slane %v418, %v421
    %v439 = vunpack.c.l.b16 %v402
    %v440 = vunpack.c.l.b16 %v403
    %v441 = vunpack.c.l.b16 %v404
    %v442 = vunpack.c.l.b16 %v405
    %v443 = vunpack.c.l.b16 %v406
    %v444 = vunpack.c.l.b16 %v407
    %v445 = vunpack.c.l.b16 %v408
    %v446 = vunpack.c.l.b16 %v409
    %v447 = vunpack.c.l.b16 %v410
    %v448 = vunpack.c.l.b16 %v411
    %v449 = vunpack.c.l.b16 %v412
    %v450 = vunpack.c.l.b16 %v413
    %v451 = vunpack.c.l.b16 %v414
    %v452 = vunpack.c.l.b16 %v415
    %v453 = vunpack.c.l.b16 %v416
    %v454 = vunpack.c.l.b16 %v417
    %v455 = vpack.c.b16 %v440, %v439
    %v456 = vpack.c.b16 %v442, %v441
    %v457 = vpack.c.b16 %v444, %v443
    %v458 = vpack.c.b16 %v446, %v445
    %v459 = vpack.c.b16 %v448, %v447
    %v460 = vpack.c.b16 %v450, %v449
    %v461 = vpack.c.b16 %v452, %v451
    %v462 = vpack.c.b16 %v454, %v453
    %471 = vmatprep.subr.bf16.mxu0 0
    %472 = vmatpush1.bf16.msra.mxu0 %v455
    %473 = vmatprep.subr.bf16.mxu0 0
    %474 = vmatpush1.bf16.msra.mxu0 %v456
    %475 = vmatprep.subr.bf16.mxu0 0
    %476 = vmatpush1.bf16.msra.mxu0 %v457
    %477 = vmatprep.subr.bf16.mxu0 0
    %478 = vmatpush1.bf16.msra.mxu0 %v458
    %479 = vmatprep.subr.bf16.mxu0 0
    %480 = vmatpush1.bf16.msra.mxu0 %v459
    %481 = vmatprep.subr.bf16.mxu0 0
    %482 = vmatpush1.bf16.msra.mxu0 %v460
    %483 = vmatprep.subr.bf16.mxu0 0
    %484 = vmatpush1.bf16.msra.mxu0 %v461
    %485 = vmatprep.subr.bf16.mxu0 0
    %486 = vmatpush1.bf16.msra.mxu0 %v462
    %487 = vmatprep.subr.bf16.mxu0 0
    %488 = vmatpush1.bf16.msra.mxu0 0
    %489 = vmatprep.subr.bf16.mxu0 0
    %490 = vmatpush1.bf16.msra.mxu0 0
    %491 = vmatprep.subr.bf16.mxu0 0
    %492 = vmatpush1.bf16.msra.mxu0 0
    %493 = vmatprep.subr.bf16.mxu0 0
    %494 = vmatpush1.bf16.msra.mxu0 0
    %495 = vmatprep.subr.bf16.mxu0 0
    %496 = vmatpush1.bf16.msra.mxu0 0
    %497 = vmatprep.subr.bf16.mxu0 0
    %498 = vmatpush1.bf16.msra.mxu0 0
    %499 = vmatprep.subr.bf16.mxu0 0
    %500 = vmatpush1.bf16.msra.mxu0 0
    %501 = vmatprep.subr.bf16.mxu0 0
    %502 = vmatpush1.bf16.msra.mxu0 0
    %503 = vmatprep.mubr.bf16.mxu0 0
    %504 = vmatmul.mubr.bf16.gmra.mrb[0].mxu0 %v394
    %v505 = vpop.f32.mrb[0].mxu0
    %v506 = vadd.f32 %v422, %v505
    %v507 = vpop.f32.mrb[0].mxu0
    %v508 = vpop.f32.mrb[0].mxu0
    %v509 = vadd.f32 %v422, %v508
    %v510 = vpop.f32.mrb[0].mxu0
    %511 = vmatprep.mubr.bf16.mxu0 0
    %512 = vmatmul.mubr.bf16.gmra.mrb[0].mxu0 %v395
    %v513 = vpop.f32.mrb[0].mxu0
    %v514 = vadd.f32 %v422, %v513
    %v515 = vpop.f32.mrb[0].mxu0
    %v516 = vpop.f32.mrb[0].mxu0
    %v517 = vadd.f32 %v422, %v516
    %v518 = vpop.f32.mrb[0].mxu0
    %519 = vmatprep.mubr.bf16.mxu0 0
    %520 = vmatmul.mubr.bf16.gmra.mrb[0].mxu0 %v396
    %v521 = vpop.f32.mrb[0].mxu0
    %v522 = vadd.f32 %v422, %v521
    %v523 = vpop.f32.mrb[0].mxu0
    %v524 = vpop.f32.mrb[0].mxu0
    %v525 = vadd.f32 %v422, %v524
    %v526 = vpop.f32.mrb[0].mxu0
    %527 = vmatprep.mubr.bf16.mxu0 0
    %528 = vmatmul.mubr.bf16.gmra.mrb[0].mxu0 %v397
    %v529 = vpop.f32.mrb[0].mxu0
    %v530 = vadd.f32 %v422, %v529
    %v531 = vpop.f32.mrb[0].mxu0
    %v532 = vpop.f32.mrb[0].mxu0
    %v533 = vadd.f32 %v422, %v532
    %v534 = vpop.f32.mrb[0].mxu0
    %535 = vmatprep.mubr.bf16.mxu0 0
    %536 = vmatmul.mubr.bf16.gmra.mrb[0].mxu0 %v398
    %v537 = vpop.f32.mrb[0].mxu0
    %v538 = vadd.f32 %v422, %v537
    %v539 = vpop.f32.mrb[0].mxu0
    %v540 = vpop.f32.mrb[0].mxu0
    %v541 = vadd.f32 %v422, %v540
    %v542 = vpop.f32.mrb[0].mxu0
    %543 = vmatprep.mubr.bf16.mxu0 0
    %544 = vmatmul.mubr.bf16.gmra.mrb[0].mxu0 %v399
    %v545 = vpop.f32.mrb[0].mxu0
    %v546 = vadd.f32 %v422, %v545
    %v547 = vpop.f32.mrb[0].mxu0
    %v548 = vpop.f32.mrb[0].mxu0
    %v549 = vadd.f32 %v422, %v548
    %v550 = vpop.f32.mrb[0].mxu0
    %551 = vmatprep.mubr.bf16.mxu0 0
    %552 = vmatmul.mubr.bf16.gmra.mrb[0].mxu0 %v400
    %v553 = vpop.f32.mrb[0].mxu0
    %v554 = vadd.f32 %v422, %v553
    %v555 = vpop.f32.mrb[0].mxu0
    %v556 = vpop.f32.mrb[0].mxu0
    %v557 = vadd.f32 %v422, %v556
    %v558 = vpop.f32.mrb[0].mxu0
    %559 = vmatprep.mubr.bf16.mxu0 0
    %560 = vmatmul.mubr.bf16.gmra.mrb[0].mxu0 %v401
    %v561 = vpop.f32.mrb[0].mxu0
    %v562 = vadd.f32 %v422, %v561
    %v563 = vpop.f32.mrb[0].mxu0
    %v564 = vpop.f32.mrb[0].mxu0
    %v565 = vadd.f32 %v422, %v564
    %v566 = vpop.f32.mrb[0].mxu0
    %567 = vdwg.mxu0
    %v568 = vmax.f32 %v506, 0.0
    %v569 = vmax.f32 %v509, 0.0
    %v570 = vmax.f32 %v514, 0.0
    %v571 = vmax.f32 %v517, 0.0
    %v572 = vmax.f32 %v522, 0.0
    %v573 = vmax.f32 %v525, 0.0
    %v574 = vmax.f32 %v530, 0.0
    %v575 = vmax.f32 %v533, 0.0
    %v576 = vmax.f32 %v538, 0.0
    %v577 = vmax.f32 %v541, 0.0
    %v578 = vmax.f32 %v546, 0.0
    %v579 = vmax.f32 %v549, 0.0
    %v580 = vmax.f32 %v554, 0.0
    %v581 = vmax.f32 %v557, 0.0
    %v582 = vmax.f32 %v562, 0.0
    %v583 = vmax.f32 %v565, 0.0
    %v584 = vpack.c.bf16 %v569, %v568
    %v585 = vpack.c.bf16 %v571, %v570
    %v586 = vpack.c.bf16 %v573, %v572
    %v587 = vpack.c.bf16 %v575, %v574
    %v588 = vpack.c.bf16 %v577, %v576
    %v589 = vpack.c.bf16 %v579, %v578
    %v590 = vpack.c.bf16 %v581, %v580
    %v591 = vpack.c.bf16 %v583, %v582
    %v592 = vld [vmem:[#allocation2 + $0x88] sm:$0xf]
    %v593 = vld [vmem:[#allocation2 + $0x8c] sm:$0xf]
    %v594 = vld [vmem:[#allocation2 + $0x90] sm:$0xf]
    %v595 = vld [vmem:[#allocation2 + $0x94] sm:$0xf]
    %v596 = vld [vmem:[#allocation2 + $0x98] sm:$0xf]
    %v597 = vld [vmem:[#allocation2 + $0x9c] sm:$0xf]
    %v598 = vld [vmem:[#allocation2 + $0xa0] sm:$0xf]
    %v599 = vld [vmem:[#allocation2 + $0xa4] sm:$0xf]
    %v600 = vld [vmem:[#allocation2 + $0xa8] sm:$0xf]
    %v601 = vld [vmem:[#allocation2 + $0xac] sm:$0xf]
    %v602 = vld [vmem:[#allocation2 + $0xb0] sm:$0xf]
    %v603 = vld [vmem:[#allocation2 + $0xb4] sm:$0xf]
    %v604 = vld [vmem:[#allocation2 + $0xb8] sm:$0xf]
    %v605 = vld [vmem:[#allocation2 + $0xbc] sm:$0xf]
    %v606 = vld [vmem:[#allocation2 + $0xc0] sm:$0xf]
    %v607 = vld [vmem:[#allocation2 + $0xc4] sm:$0xf]
    %v608 = vld [vmem:[%s2 + $0x3] sm:$0x1]
    %v609 = vlaneseq
    %v610 = vshrl.u32 %v609, 7
    %v611 = vsub.s32 0, %v610
    %v612 = vrot.slane %v608, %v611
    %v629 = vunpack.c.l.b16 %v592
    %v630 = vunpack.c.l.b16 %v593
    %v631 = vunpack.c.l.b16 %v594
    %v632 = vunpack.c.l.b16 %v595
    %v633 = vunpack.c.l.b16 %v596
    %v634 = vunpack.c.l.b16 %v597
    %v635 = vunpack.c.l.b16 %v598
    %v636 = vunpack.c.l.b16 %v599
    %v637 = vunpack.c.l.b16 %v600
    %v638 = vunpack.c.l.b16 %v601
    %v639 = vunpack.c.l.b16 %v602
    %v640 = vunpack.c.l.b16 %v603
    %v641 = vunpack.c.l.b16 %v604
    %v642 = vunpack.c.l.b16 %v605
    %v643 = vunpack.c.l.b16 %v606
    %v644 = vunpack.c.l.b16 %v607
    %v645 = vpack.c.b16 %v630, %v629
    %v646 = vpack.c.b16 %v632, %v631
    %v647 = vpack.c.b16 %v634, %v633
    %v648 = vpack.c.b16 %v636, %v635
    %v649 = vpack.c.b16 %v638, %v637
    %v650 = vpack.c.b16 %v640, %v639
    %v651 = vpack.c.b16 %v642, %v641
    %v652 = vpack.c.b16 %v644, %v643
    %661 = vmatprep.subr.bf16.mxu0 0
    %662 = vmatpush1.bf16.msra.mxu0 %v645
    %663 = vmatprep.subr.bf16.mxu0 0
    %664 = vmatpush1.bf16.msra.mxu0 %v646
    %665 = vmatprep.subr.bf16.mxu0 0
    %666 = vmatpush1.bf16.msra.mxu0 %v647
    %667 = vmatprep.subr.bf16.mxu0 0
    %668 = vmatpush1.bf16.msra.mxu0 %v648
    %669 = vmatprep.subr.bf16.mxu0 0
    %670 = vmatpush1.bf16.msra.mxu0 %v649
    %671 = vmatprep.subr.bf16.mxu0 0
    %672 = vmatpush1.bf16.msra.mxu0 %v650
    %673 = vmatprep.subr.bf16.mxu0 0
    %674 = vmatpush1.bf16.msra.mxu0 %v651
    %675 = vmatprep.subr.bf16.mxu0 0
    %676 = vmatpush1.bf16.msra.mxu0 %v652
    %677 = vmatprep.subr.bf16.mxu0 0
    %678 = vmatpush1.bf16.msra.mxu0 0
    %679 = vmatprep.subr.bf16.mxu0 0
    %680 = vmatpush1.bf16.msra.mxu0 0
    %681 = vmatprep.subr.bf16.mxu0 0
    %682 = vmatpush1.bf16.msra.mxu0 0
    %683 = vmatprep.subr.bf16.mxu0 0
    %684 = vmatpush1.bf16.msra.mxu0 0
    %685 = vmatprep.subr.bf16.mxu0 0
    %686 = vmatpush1.bf16.msra.mxu0 0
    %687 = vmatprep.subr.bf16.mxu0 0
    %688 = vmatpush1.bf16.msra.mxu0 0
    %689 = vmatprep.subr.bf16.mxu0 0
    %690 = vmatpush1.bf16.msra.mxu0 0
    %691 = vmatprep.subr.bf16.mxu0 0
    %692 = vmatpush1.bf16.msra.mxu0 0
    %693 = vmatprep.mubr.bf16.mxu0 0
    %694 = vmatmul.mubr.bf16.gmra.mrb[0].mxu0 %v584
    %v695 = vpop.f32.mrb[0].mxu0
    %v696 = vadd.f32 %v612, %v695
    %v697 = vpop.f32.mrb[0].mxu0
    %v698 = vpop.f32.mrb[0].mxu0
    %v699 = vadd.f32 %v612, %v698
    %v700 = vpop.f32.mrb[0].mxu0
    %701 = vmatprep.mubr.bf16.mxu0 0
    %702 = vmatmul.mubr.bf16.gmra.mrb[0].mxu0 %v585
    %v703 = vpop.f32.mrb[0].mxu0
    %v704 = vadd.f32 %v612, %v703
    %v705 = vpop.f32.mrb[0].mxu0
    %v706 = vpop.f32.mrb[0].mxu0
    %v707 = vadd.f32 %v612, %v706
    %v708 = vpop.f32.mrb[0].mxu0
    %709 = vmatprep.mubr.bf16.mxu0 0
    %710 = vmatmul.mubr.bf16.gmra.mrb[0].mxu0 %v586
    %v711 = vpop.f32.mrb[0].mxu0
    %v712 = vadd.f32 %v612, %v711
    %v713 = vpop.f32.mrb[0].mxu0
    %v714 = vpop.f32.mrb[0].mxu0
    %v715 = vadd.f32 %v612, %v714
    %v716 = vpop.f32.mrb[0].mxu0
    %717 = vmatprep.mubr.bf16.mxu0 0
    %718 = vmatmul.mubr.bf16.gmra.mrb[0].mxu0 %v587
    %v719 = vpop.f32.mrb[0].mxu0
    %v720 = vadd.f32 %v612, %v719
    %v721 = vpop.f32.mrb[0].mxu0
    %v722 = vpop.f32.mrb[0].mxu0
    %v723 = vadd.f32 %v612, %v722
    %v724 = vpop.f32.mrb[0].mxu0
    %725 = vmatprep.mubr.bf16.mxu0 0
    %726 = vmatmul.mubr.bf16.gmra.mrb[0].mxu0 %v588
    %v727 = vpop.f32.mrb[0].mxu0
    %v728 = vadd.f32 %v612, %v727
    %v729 = vpop.f32.mrb[0].mxu0
    %v730 = vpop.f32.mrb[0].mxu0
    %v731 = vadd.f32 %v612, %v730
    %v732 = vpop.f32.mrb[0].mxu0
    %733 = vmatprep.mubr.bf16.mxu0 0
    %734 = vmatmul.mubr.bf16.gmra.mrb[0].mxu0 %v589
    %v735 = vpop.f32.mrb[0].mxu0
    %v736 = vadd.f32 %v612, %v735
    %v737 = vpop.f32.mrb[0].mxu0
    %v738 = vpop.f32.mrb[0].mxu0
    %v739 = vadd.f32 %v612, %v738
    %v740 = vpop.f32.mrb[0].mxu0
    %741 = vmatprep.mubr.bf16.mxu0 0
    %742 = vmatmul.mubr.bf16.gmra.mrb[0].mxu0 %v590
    %v743 = vpop.f32.mrb[0].mxu0
    %v744 = vadd.f32 %v612, %v743
    %v745 = vpop.f32.mrb[0].mxu0
    %v746 = vpop.f32.mrb[0].mxu0
    %v747 = vadd.f32 %v612, %v746
    %v748 = vpop.f32.mrb[0].mxu0
    %749 = vmatprep.mubr.bf16.mxu0 0
    %750 = vmatmul.mubr.bf16.gmra.mrb[0].mxu0 %v591
    %v751 = vpop.f32.mrb[0].mxu0
    %v752 = vadd.f32 %v612, %v751
    %v753 = vpop.f32.mrb[0].mxu0
    %v754 = vpop.f32.mrb[0].mxu0
    %v755 = vadd.f32 %v612, %v754
    %v756 = vpop.f32.mrb[0].mxu0
    %757 = vdwg.mxu0
    %v758 = vlaneseq
    %v759 = vand.u32 %v758, 127
    %vm760 = vcmp.lt.s32.totalorder %v759, 24
    %vm761 = vcmp.ge.s32.totalorder %v759, 0
    %vm762 = vcmp.lt.s32.totalorder %v759, 8
    %vm763 = vmand %vm761, %vm762
    %v764 = vsel %vm763, %v696, -inf
    %v765 = vsel %vm763, %v699, -inf
    %v766 = vsel %vm763, %v704, -inf
    %v767 = vsel %vm763, %v707, -inf
    %v768 = vsel %vm763, %v712, -inf
    %v769 = vsel %vm763, %v715, -inf
    %v770 = vsel %vm763, %v720, -inf
    %v771 = vsel %vm763, %v723, -inf
    %v772 = vsel %vm763, %v728, -inf
    %v773 = vsel %vm763, %v731, -inf
    %v774 = vsel %vm763, %v736, -inf
    %v775 = vsel %vm763, %v739, -inf
    %v776 = vsel %vm763, %v744, -inf
    %v777 = vsel %vm763, %v747, -inf
    %v778 = vsel %vm763, %v752, -inf
    %v779 = vsel %vm763, %v755, -inf
    %780 = vmax.xlane.f32.xlu0 %v764
    %v781 = vpop.xlane.xlu0 %780
    %782 = vmax.xlane.f32.xlu0 %v765
    %v783 = vpop.xlane.xlu0 %782
    %784 = vmax.xlane.f32.xlu0 %v766
    %v785 = vpop.xlane.xlu0 %784
    %786 = vmax.xlane.f32.xlu0 %v767
    %v787 = vpop.xlane.xlu0 %786
    %788 = vmax.xlane.f32.xlu0 %v768
    %v789 = vpop.xlane.xlu0 %788
    %790 = vmax.xlane.f32.xlu0 %v769
    %v791 = vpop.xlane.xlu0 %790
    %792 = vmax.xlane.f32.xlu0 %v770
    %v793 = vpop.xlane.xlu0 %792
    %794 = vmax.xlane.f32.xlu0 %v771
    %v795 = vpop.xlane.xlu0 %794
    %796 = vmax.xlane.f32.xlu0 %v772
    %v797 = vpop.xlane.xlu0 %796
    %798 = vmax.xlane.f32.xlu0 %v773
    %v799 = vpop.xlane.xlu0 %798
    %800 = vmax.xlane.f32.xlu0 %v774
    %v801 = vpop.xlane.xlu0 %800
    %802 = vmax.xlane.f32.xlu0 %v775
    %v803 = vpop.xlane.xlu0 %802
    %804 = vmax.xlane.f32.xlu0 %v776
    %v805 = vpop.xlane.xlu0 %804
    %806 = vmax.xlane.f32.xlu0 %v777
    %v807 = vpop.xlane.xlu0 %806
    %808 = vmax.xlane.f32.xlu0 %v778
    %v809 = vpop.xlane.xlu0 %808
    %810 = vmax.xlane.f32.xlu0 %v779
    %v811 = vpop.xlane.xlu0 %810
    %v812 = vsel %vm763, %v781, 0.0
    %v813 = vsel %vm763, %v783, 0.0
    %v814 = vsel %vm763, %v785, 0.0
    %v815 = vsel %vm763, %v787, 0.0
    %v816 = vsel %vm763, %v789, 0.0
    %v817 = vsel %vm763, %v791, 0.0
    %v818 = vsel %vm763, %v793, 0.0
    %v819 = vsel %vm763, %v795, 0.0
    %v820 = vsel %vm763, %v797, 0.0
    %v821 = vsel %vm763, %v799, 0.0
    %v822 = vsel %vm763, %v801, 0.0
    %v823 = vsel %vm763, %v803, 0.0
    %v824 = vsel %vm763, %v805, 0.0
    %v825 = vsel %vm763, %v807, 0.0
    %v826 = vsel %vm763, %v809, 0.0
    %v827 = vsel %vm763, %v811, 0.0
    %vm828 = vcmp.ge.s32.totalorder %v759, 8
    %vm829 = vcmp.lt.s32.totalorder %v759, 16
    %vm830 = vmand %vm828, %vm829
    %v831 = vsel %vm830, %v696, -inf
    %v832 = vsel %vm830, %v699, -inf
    %v833 = vsel %vm830, %v704, -inf
    %v834 = vsel %vm830, %v707, -inf
    %v835 = vsel %vm830, %v712, -inf
    %v836 = vsel %vm830, %v715, -inf
    %v837 = vsel %vm830, %v720, -inf
    %v838 = vsel %vm830, %v723, -inf
    %v839 = vsel %vm830, %v728, -inf
    %v840 = vsel %vm830, %v731, -inf
    %v841 = vsel %vm830, %v736, -inf
    %v842 = vsel %vm830, %v739, -inf
    %v843 = vsel %vm830, %v744, -inf
    %v844 = vsel %vm830, %v747, -inf
    %v845 = vsel %vm830, %v752, -inf
    %v846 = vsel %vm830, %v755, -inf
    %847 = vmax.xlane.f32.xlu0 %v831
    %v848 = vpop.xlane.xlu0 %847
    %849 = vmax.xlane.f32.xlu0 %v832
    %v850 = vpop.xlane.xlu0 %849
    %851 = vmax.xlane.f32.xlu0 %v833
    %v852 = vpop.xlane.xlu0 %851
    %853 = vmax.xlane.f32.xlu0 %v834
    %v854 = vpop.xlane.xlu0 %853
    %855 = vmax.xlane.f32.xlu0 %v835
    %v856 = vpop.xlane.xlu0 %855
    %857 = vmax.xlane.f32.xlu0 %v836
    %v858 = vpop.xlane.xlu0 %857
    %859 = vmax.xlane.f32.xlu0 %v837
    %v860 = vpop.xlane.xlu0 %859
    %861 = vmax.xlane.f32.xlu0 %v838
    %v862 = vpop.xlane.xlu0 %861
    %863 = vmax.xlane.f32.xlu0 %v839
    %v864 = vpop.xlane.xlu0 %863
    %865 = vmax.xlane.f32.xlu0 %v840
    %v866 = vpop.xlane.xlu0 %865
    %867 = vmax.xlane.f32.xlu0 %v841
    %v868 = vpop.xlane.xlu0 %867
    %869 = vmax.xlane.f32.xlu0 %v842
    %v870 = vpop.xlane.xlu0 %869
    %871 = vmax.xlane.f32.xlu0 %v843
    %v872 = vpop.xlane.xlu0 %871
    %873 = vmax.xlane.f32.xlu0 %v844
    %v874 = vpop.xlane.xlu0 %873
    %875 = vmax.xlane.f32.xlu0 %v845
    %v876 = vpop.xlane.xlu0 %875
    %877 = vmax.xlane.f32.xlu0 %v846
    %v878 = vpop.xlane.xlu0 %877
    %v879 = vsel %vm830, %v848, %v812
    %v880 = vsel %vm830, %v850, %v813
    %v881 = vsel %vm830, %v852, %v814
    %v882 = vsel %vm830, %v854, %v815
    %v883 = vsel %vm830, %v856, %v816
    %v884 = vsel %vm830, %v858, %v817
    %v885 = vsel %vm830, %v860, %v818
    %v886 = vsel %vm830, %v862, %v819
    %v887 = vsel %vm830, %v864, %v820
    %v888 = vsel %vm830, %v866, %v821
    %v889 = vsel %vm830, %v868, %v822
    %v890 = vsel %vm830, %v870, %v823
    %v891 = vsel %vm830, %v872, %v824
    %v892 = vsel %vm830, %v874, %v825
    %v893 = vsel %vm830, %v876, %v826
    %v894 = vsel %vm830, %v878, %v827
    %vm895 = vcmp.ge.s32.totalorder %v759, 16
    %vm896 = vmand %vm895, %vm760
    %v897 = vsel %vm896, %v696, -inf
    %v898 = vsel %vm896, %v699, -inf
    %v899 = vsel %vm896, %v704, -inf
    %v900 = vsel %vm896, %v707, -inf
    %v901 = vsel %vm896, %v712, -inf
    %v902 = vsel %vm896, %v715, -inf
    %v903 = vsel %vm896, %v720, -inf
    %v904 = vsel %vm896, %v723, -inf
    %v905 = vsel %vm896, %v728, -inf
    %v906 = vsel %vm896, %v731, -inf
    %v907 = vsel %vm896, %v736, -inf
    %v908 = vsel %vm896, %v739, -inf
    %v909 = vsel %vm896, %v744, -inf
    %v910 = vsel %vm896, %v747, -inf
    %v911 = vsel %vm896, %v752, -inf
    %v912 = vsel %vm896, %v755, -inf
    %913 = vmax.xlane.f32.xlu0 %v897
    %v914 = vpop.xlane.xlu0 %913
    %915 = vmax.xlane.f32.xlu0 %v898
    %v916 = vpop.xlane.xlu0 %915
    %917 = vmax.xlane.f32.xlu0 %v899
    %v918 = vpop.xlane.xlu0 %917
    %919 = vmax.xlane.f32.xlu0 %v900
    %v920 = vpop.xlane.xlu0 %919
    %921 = vmax.xlane.f32.xlu0 %v901
    %v922 = vpop.xlane.xlu0 %921
    %923 = vmax.xlane.f32.xlu0 %v902
    %v924 = vpop.xlane.xlu0 %923
    %925 = vmax.xlane.f32.xlu0 %v903
    %v926 = vpop.xlane.xlu0 %925
    %927 = vmax.xlane.f32.xlu0 %v904
    %v928 = vpop.xlane.xlu0 %927
    %929 = vmax.xlane.f32.xlu0 %v905
    %v930 = vpop.xlane.xlu0 %929
    %931 = vmax.xlane.f32.xlu0 %v906
    %v932 = vpop.xlane.xlu0 %931
    %933 = vmax.xlane.f32.xlu0 %v907
    %v934 = vpop.xlane.xlu0 %933
    %935 = vmax.xlane.f32.xlu0 %v908
    %v936 = vpop.xlane.xlu0 %935
    %937 = vmax.xlane.f32.xlu0 %v909
    %v938 = vpop.xlane.xlu0 %937
    %939 = vmax.xlane.f32.xlu0 %v910
    %v940 = vpop.xlane.xlu0 %939
    %941 = vmax.xlane.f32.xlu0 %v911
    %v942 = vpop.xlane.xlu0 %941
    %943 = vmax.xlane.f32.xlu0 %v912
    %v944 = vpop.xlane.xlu0 %943
    %v945 = vsel %vm896, %v914, %v879
    %v946 = vsel %vm896, %v916, %v880
    %v947 = vsel %vm896, %v918, %v881
    %v948 = vsel %vm896, %v920, %v882
    %v949 = vsel %vm896, %v922, %v883
    %v950 = vsel %vm896, %v924, %v884
    %v951 = vsel %vm896, %v926, %v885
    %v952 = vsel %vm896, %v928, %v886
    %v953 = vsel %vm896, %v930, %v887
    %v954 = vsel %vm896, %v932, %v888
    %v955 = vsel %vm896, %v934, %v889
    %v956 = vsel %vm896, %v936, %v890
    %v957 = vsel %vm896, %v938, %v891
    %v958 = vsel %vm896, %v940, %v892
    %v959 = vsel %vm896, %v942, %v893
    %v960 = vsel %vm896, %v944, %v894
    %v961 = vsub.f32 %v696, %v945
    %v962 = vsub.f32 %v699, %v946
    %v963 = vsub.f32 %v704, %v947
    %v964 = vsub.f32 %v707, %v948
    %v965 = vsub.f32 %v712, %v949
    %v966 = vsub.f32 %v715, %v950
    %v967 = vsub.f32 %v720, %v951
    %v968 = vsub.f32 %v723, %v952
    %v969 = vsub.f32 %v728, %v953
    %v970 = vsub.f32 %v731, %v954
    %v971 = vsub.f32 %v736, %v955
    %v972 = vsub.f32 %v739, %v956
    %v973 = vsub.f32 %v744, %v957
    %v974 = vsub.f32 %v747, %v958
    %v975 = vsub.f32 %v752, %v959
    %v976 = vsub.f32 %v755, %v960
    %v977 = vsel %vm760, %v961, 0.0
    %v978 = vsel %vm760, %v962, 0.0
    %v979 = vsel %vm760, %v963, 0.0
    %v980 = vsel %vm760, %v964, 0.0
    %v981 = vsel %vm760, %v965, 0.0
    %v982 = vsel %vm760, %v966, 0.0
    %v983 = vsel %vm760, %v967, 0.0
    %v984 = vsel %vm760, %v968, 0.0
    %v985 = vsel %vm760, %v969, 0.0
    %v986 = vsel %vm760, %v970, 0.0
    %v987 = vsel %vm760, %v971, 0.0
    %v988 = vsel %vm760, %v972, 0.0
    %v989 = vsel %vm760, %v973, 0.0
    %v990 = vsel %vm760, %v974, 0.0
    %v991 = vsel %vm760, %v975, 0.0
    %v992 = vsel %vm760, %v976, 0.0
    %v993 = vmul.f32 %v977, 1.442695
    %v994 = vpow.pop %v993
    %v995 = vmul.f32 %v978, 1.442695
    %v996 = vpow.pop %v995
    %v997 = vmul.f32 %v979, 1.442695
    %v998 = vpow.pop %v997
    %v999 = vmul.f32 %v980, 1.442695
    %v1000 = vpow.pop %v999
    %v1001 = vmul.f32 %v981, 1.442695
    %v1002 = vpow.pop %v1001
    %v1003 = vmul.f32 %v982, 1.442695
    %v1004 = vpow.pop %v1003
    %v1005 = vmul.f32 %v983, 1.442695
    %v1006 = vpow.pop %v1005
    %v1007 = vmul.f32 %v984, 1.442695
    %v1008 = vpow.pop %v1007
    %v1009 = vmul.f32 %v985, 1.442695
    %v1010 = vpow.pop %v1009
    %v1011 = vmul.f32 %v986, 1.442695
    %v1012 = vpow.pop %v1011
    %v1013 = vmul.f32 %v987, 1.442695
    %v1014 = vpow.pop %v1013
    %v1015 = vmul.f32 %v988, 1.442695
    %v1016 = vpow.pop %v1015
    %v1017 = vmul.f32 %v989, 1.442695
    %v1018 = vpow.pop %v1017
    %v1019 = vmul.f32 %v990, 1.442695
    %v1020 = vpow.pop %v1019
    %v1021 = vmul.f32 %v991, 1.442695
    %v1022 = vpow.pop %v1021
    %v1023 = vmul.f32 %v992, 1.442695
    %v1024 = vpow.pop %v1023
    %v1025 = vsel %vm763, %v994, 0.0
    %v1026 = vsel %vm763, %v996, 0.0
    %v1027 = vsel %vm763, %v998, 0.0
    %v1028 = vsel %vm763, %v1000, 0.0
    %v1029 = vsel %vm763, %v1002, 0.0
    %v1030 = vsel %vm763, %v1004, 0.0
    %v1031 = vsel %vm763, %v1006, 0.0
    %v1032 = vsel %vm763, %v1008, 0.0
    %v1033 = vsel %vm763, %v1010, 0.0
    %v1034 = vsel %vm763, %v1012, 0.0
    %v1035 = vsel %vm763, %v1014, 0.0
    %v1036 = vsel %vm763, %v1016, 0.0
    %v1037 = vsel %vm763, %v1018, 0.0
    %v1038 = vsel %vm763, %v1020, 0.0
    %v1039 = vsel %vm763, %v1022, 0.0
    %v1040 = vsel %vm763, %v1024, 0.0
    %1041 = vadd.xlane.f32.xlu0 %v1025
    %v1042 = vpop.xlane.xlu0 %1041
    %1043 = vadd.xlane.f32.xlu0 %v1026
    %v1044 = vpop.xlane.xlu0 %1043
    %1045 = vadd.xlane.f32.xlu0 %v1027
    %v1046 = vpop.xlane.xlu0 %1045
    %1047 = vadd.xlane.f32.xlu0 %v1028
    %v1048 = vpop.xlane.xlu0 %1047
    %1049 = vadd.xlane.f32.xlu0 %v1029
    %v1050 = vpop.xlane.xlu0 %1049
    %1051 = vadd.xlane.f32.xlu0 %v1030
    %v1052 = vpop.xlane.xlu0 %1051
    %1053 = vadd.xlane.f32.xlu0 %v1031
    %v1054 = vpop.xlane.xlu0 %1053
    %1055 = vadd.xlane.f32.xlu0 %v1032
    %v1056 = vpop.xlane.xlu0 %1055
    %1057 = vadd.xlane.f32.xlu0 %v1033
    %v1058 = vpop.xlane.xlu0 %1057
    %1059 = vadd.xlane.f32.xlu0 %v1034
    %v1060 = vpop.xlane.xlu0 %1059
    %1061 = vadd.xlane.f32.xlu0 %v1035
    %v1062 = vpop.xlane.xlu0 %1061
    %1063 = vadd.xlane.f32.xlu0 %v1036
    %v1064 = vpop.xlane.xlu0 %1063
    %1065 = vadd.xlane.f32.xlu0 %v1037
    %v1066 = vpop.xlane.xlu0 %1065
    %1067 = vadd.xlane.f32.xlu0 %v1038
    %v1068 = vpop.xlane.xlu0 %1067
    %1069 = vadd.xlane.f32.xlu0 %v1039
    %v1070 = vpop.xlane.xlu0 %1069
    %1071 = vadd.xlane.f32.xlu0 %v1040
    %v1072 = vpop.xlane.xlu0 %1071
    %v1073 = vsel %vm763, %v1042, 1.0
    %v1074 = vsel %vm763, %v1044, 1.0
    %v1075 = vsel %vm763, %v1046, 1.0
    %v1076 = vsel %vm763, %v1048, 1.0
    %v1077 = vsel %vm763, %v1050, 1.0
    %v1078 = vsel %vm763, %v1052, 1.0
    %v1079 = vsel %vm763, %v1054, 1.0
    %v1080 = vsel %vm763, %v1056, 1.0
    %v1081 = vsel %vm763, %v1058, 1.0
    %v1082 = vsel %vm763, %v1060, 1.0
    %v1083 = vsel %vm763, %v1062, 1.0
    %v1084 = vsel %vm763, %v1064, 1.0
    %v1085 = vsel %vm763, %v1066, 1.0
    %v1086 = vsel %vm763, %v1068, 1.0
    %v1087 = vsel %vm763, %v1070, 1.0
    %v1088 = vsel %vm763, %v1072, 1.0
    %v1089 = vsel %vm830, %v994, 0.0
    %v1090 = vsel %vm830, %v996, 0.0
    %v1091 = vsel %vm830, %v998, 0.0
    %v1092 = vsel %vm830, %v1000, 0.0
    %v1093 = vsel %vm830, %v1002, 0.0
    %v1094 = vsel %vm830, %v1004, 0.0
    %v1095 = vsel %vm830, %v1006, 0.0
    %v1096 = vsel %vm830, %v1008, 0.0
    %v1097 = vsel %vm830, %v1010, 0.0
    %v1098 = vsel %vm830, %v1012, 0.0
    %v1099 = vsel %vm830, %v1014, 0.0
    %v1100 = vsel %vm830, %v1016, 0.0
    %v1101 = vsel %vm830, %v1018, 0.0
    %v1102 = vsel %vm830, %v1020, 0.0
    %v1103 = vsel %vm830, %v1022, 0.0
    %v1104 = vsel %vm830, %v1024, 0.0
    %1105 = vadd.xlane.f32.xlu0 %v1089
    %v1106 = vpop.xlane.xlu0 %1105
    %1107 = vadd.xlane.f32.xlu0 %v1090
    %v1108 = vpop.xlane.xlu0 %1107
    %1109 = vadd.xlane.f32.xlu0 %v1091
    %v1110 = vpop.xlane.xlu0 %1109
    %1111 = vadd.xlane.f32.xlu0 %v1092
    %v1112 = vpop.xlane.xlu0 %1111
    %1113 = vadd.xlane.f32.xlu0 %v1093
    %v1114 = vpop.xlane.xlu0 %1113
    %1115 = vadd.xlane.f32.xlu0 %v1094
    %v1116 = vpop.xlane.xlu0 %1115
    %1117 = vadd.xlane.f32.xlu0 %v1095
    %v1118 = vpop.xlane.xlu0 %1117
    %1119 = vadd.xlane.f32.xlu0 %v1096
    %v1120 = vpop.xlane.xlu0 %1119
    %1121 = vadd.xlane.f32.xlu0 %v1097
    %v1122 = vpop.xlane.xlu0 %1121
    %1123 = vadd.xlane.f32.xlu0 %v1098
    %v1124 = vpop.xlane.xlu0 %1123
    %1125 = vadd.xlane.f32.xlu0 %v1099
    %v1126 = vpop.xlane.xlu0 %1125
    %1127 = vadd.xlane.f32.xlu0 %v1100
    %v1128 = vpop.xlane.xlu0 %1127
    %1129 = vadd.xlane.f32.xlu0 %v1101
    %v1130 = vpop.xlane.xlu0 %1129
    %1131 = vadd.xlane.f32.xlu0 %v1102
    %v1132 = vpop.xlane.xlu0 %1131
    %1133 = vadd.xlane.f32.xlu0 %v1103
    %v1134 = vpop.xlane.xlu0 %1133
    %1135 = vadd.xlane.f32.xlu0 %v1104
    %v1136 = vpop.xlane.xlu0 %1135
    %v1137 = vsel %vm830, %v1106, %v1073
    %v1138 = vsel %vm830, %v1108, %v1074
    %v1139 = vsel %vm830, %v1110, %v1075
    %v1140 = vsel %vm830, %v1112, %v1076
    %v1141 = vsel %vm830, %v1114, %v1077
    %v1142 = vsel %vm830, %v1116, %v1078
    %v1143 = vsel %vm830, %v1118, %v1079
    %v1144 = vsel %vm830, %v1120, %v1080
    %v1145 = vsel %vm830, %v1122, %v1081
    %v1146 = vsel %vm830, %v1124, %v1082
    %v1147 = vsel %vm830, %v1126, %v1083
    %v1148 = vsel %vm830, %v1128, %v1084
    %v1149 = vsel %vm830, %v1130, %v1085
    %v1150 = vsel %vm830, %v1132, %v1086
    %v1151 = vsel %vm830, %v1134, %v1087
    %v1152 = vsel %vm830, %v1136, %v1088
    %v1153 = vsel %vm896, %v994, 0.0
    %v1154 = vsel %vm896, %v996, 0.0
    %v1155 = vsel %vm896, %v998, 0.0
    %v1156 = vsel %vm896, %v1000, 0.0
    %v1157 = vsel %vm896, %v1002, 0.0
    %v1158 = vsel %vm896, %v1004, 0.0
    %v1159 = vsel %vm896, %v1006, 0.0
    %v1160 = vsel %vm896, %v1008, 0.0
    %v1161 = vsel %vm896, %v1010, 0.0
    %v1162 = vsel %vm896, %v1012, 0.0
    %v1163 = vsel %vm896, %v1014, 0.0
    %v1164 = vsel %vm896, %v1016, 0.0
    %v1165 = vsel %vm896, %v1018, 0.0
    %v1166 = vsel %vm896, %v1020, 0.0
    %v1167 = vsel %vm896, %v1022, 0.0
    %v1168 = vsel %vm896, %v1024, 0.0
    %1169 = vadd.xlane.f32.xlu0 %v1153
    %v1170 = vpop.xlane.xlu0 %1169
    %1171 = vadd.xlane.f32.xlu0 %v1154
    %v1172 = vpop.xlane.xlu0 %1171
    %1173 = vadd.xlane.f32.xlu0 %v1155
    %v1174 = vpop.xlane.xlu0 %1173
    %1175 = vadd.xlane.f32.xlu0 %v1156
    %v1176 = vpop.xlane.xlu0 %1175
    %1177 = vadd.xlane.f32.xlu0 %v1157
    %v1178 = vpop.xlane.xlu0 %1177
    %1179 = vadd.xlane.f32.xlu0 %v1158
    %v1180 = vpop.xlane.xlu0 %1179
    %1181 = vadd.xlane.f32.xlu0 %v1159
    %v1182 = vpop.xlane.xlu0 %1181
    %1183 = vadd.xlane.f32.xlu0 %v1160
    %v1184 = vpop.xlane.xlu0 %1183
    %1185 = vadd.xlane.f32.xlu0 %v1161
    %v1186 = vpop.xlane.xlu0 %1185
    %1187 = vadd.xlane.f32.xlu0 %v1162
    %v1188 = vpop.xlane.xlu0 %1187
    %1189 = vadd.xlane.f32.xlu0 %v1163
    %v1190 = vpop.xlane.xlu0 %1189
    %1191 = vadd.xlane.f32.xlu0 %v1164
    %v1192 = vpop.xlane.xlu0 %1191
    %1193 = vadd.xlane.f32.xlu0 %v1165
    %v1194 = vpop.xlane.xlu0 %1193
    %1195 = vadd.xlane.f32.xlu0 %v1166
    %v1196 = vpop.xlane.xlu0 %1195
    %1197 = vadd.xlane.f32.xlu0 %v1167
    %v1198 = vpop.xlane.xlu0 %1197
    %1199 = vadd.xlane.f32.xlu0 %v1168
    %v1200 = vpop.xlane.xlu0 %1199
    %v1201 = vsel %vm896, %v1170, %v1137
    %v1202 = vsel %vm896, %v1172, %v1138
    %v1203 = vsel %vm896, %v1174, %v1139
    %v1204 = vsel %vm896, %v1176, %v1140
    %v1205 = vsel %vm896, %v1178, %v1141
    %v1206 = vsel %vm896, %v1180, %v1142
    %v1207 = vsel %vm896, %v1182, %v1143
    %v1208 = vsel %vm896, %v1184, %v1144
    %v1209 = vsel %vm896, %v1186, %v1145
    %v1210 = vsel %vm896, %v1188, %v1146
    %v1211 = vsel %vm896, %v1190, %v1147
    %v1212 = vsel %vm896, %v1192, %v1148
    %v1213 = vsel %vm896, %v1194, %v1149
    %v1214 = vsel %vm896, %v1196, %v1150
    %v1215 = vsel %vm896, %v1198, %v1151
    %v1216 = vsel %vm896, %v1200, %v1152
    %v1217 = vrcp.pop %v1201
    %v1218 = vmul.f32 %v994, %v1217
    %v1219 = vrcp.pop %v1202
    %v1220 = vmul.f32 %v996, %v1219
    %v1221 = vrcp.pop %v1203
    %v1222 = vmul.f32 %v998, %v1221
    %v1223 = vrcp.pop %v1204
    %v1224 = vmul.f32 %v1000, %v1223
    %v1225 = vrcp.pop %v1205
    %v1226 = vmul.f32 %v1002, %v1225
    %v1227 = vrcp.pop %v1206
    %v1228 = vmul.f32 %v1004, %v1227
    %v1229 = vrcp.pop %v1207
    %v1230 = vmul.f32 %v1006, %v1229
    %v1231 = vrcp.pop %v1208
    %v1232 = vmul.f32 %v1008, %v1231
    %v1233 = vrcp.pop %v1209
    %v1234 = vmul.f32 %v1010, %v1233
    %v1235 = vrcp.pop %v1210
    %v1236 = vmul.f32 %v1012, %v1235
    %v1237 = vrcp.pop %v1211
    %v1238 = vmul.f32 %v1014, %v1237
    %v1239 = vrcp.pop %v1212
    %v1240 = vmul.f32 %v1016, %v1239
    %v1241 = vrcp.pop %v1213
    %v1242 = vmul.f32 %v1018, %v1241
    %v1243 = vrcp.pop %v1214
    %v1244 = vmul.f32 %v1020, %v1243
    %v1245 = vrcp.pop %v1215
    %v1246 = vmul.f32 %v1022, %v1245
    %v1247 = vrcp.pop %v1216
    %v1248 = vmul.f32 %v1024, %v1247
    %v1249 = vsel %vm760, %v1218, %v696
    %v1250 = vsel %vm760, %v1220, %v699
    %v1251 = vsel %vm760, %v1222, %v704
    %v1252 = vsel %vm760, %v1224, %v707
    %v1253 = vsel %vm760, %v1226, %v712
    %v1254 = vsel %vm760, %v1228, %v715
    %v1255 = vsel %vm760, %v1230, %v720
    %v1256 = vsel %vm760, %v1232, %v723
    %v1257 = vsel %vm760, %v1234, %v728
    %v1258 = vsel %vm760, %v1236, %v731
    %v1259 = vsel %vm760, %v1238, %v736
    %v1260 = vsel %vm760, %v1240, %v739
    %v1261 = vsel %vm760, %v1242, %v744
    %v1262 = vsel %vm760, %v1244, %v747
    %v1263 = vsel %vm760, %v1246, %v752
    %v1264 = vsel %vm760, %v1248, %v755
    %1265 = vst [vmem:[%s3] sm:$0xff] %v1249
    %1266 = vst [vmem:[%s3 + $0x8] sm:$0xff] %v1250
    %1267 = vst [vmem:[%s3 + $0x10] sm:$0xff] %v1251
    %1268 = vst [vmem:[%s3 + $0x18] sm:$0xff] %v1252
    %1269 = vst [vmem:[%s3 + $0x20] sm:$0xff] %v1253
    %1270 = vst [vmem:[%s3 + $0x28] sm:$0xff] %v1254
    %1271 = vst [vmem:[%s3 + $0x30] sm:$0xff] %v1255
    %1272 = vst [vmem:[%s3 + $0x38] sm:$0xff] %v1256
    %1273 = vst [vmem:[%s3 + $0x40] sm:$0xff] %v1257
    %1274 = vst [vmem:[%s3 + $0x48] sm:$0xff] %v1258
    %1275 = vst [vmem:[%s3 + $0x50] sm:$0xff] %v1259
    %1276 = vst [vmem:[%s3 + $0x58] sm:$0xff] %v1260
    %1277 = vst [vmem:[%s3 + $0x60] sm:$0xff] %v1261
    %1278 = vst [vmem:[%s3 + $0x68] sm:$0xff] %v1262
    %1279 = vst [vmem:[%s3 + $0x70] sm:$0xff] %v1263
    %1280 = vst [vmem:[%s3 + $0x78] sm:$0xff] %v1264
    // Predicated region
    $region18: #{net_forward.1} parent=1 // pred_check
      _
    $region19: #{net_forward.1} parent=1 // pred_check_branch
      %1282 = sbr.rel (0) target = $region21
    $region20: #{net_forward.1} parent=1 // pred_region
      _
    $region21: #{net_forward.1} parent=1 // pred_fallthru
      _
    // Predicated region
    $region22: #{net_forward.1} parent=1 // pred_check
      _
    $region23: #{net_forward.1} parent=1 // pred_check_branch
      %1284 = sbr.rel (0) target = $region25
    $region24: #{net_forward.1} parent=1 // pred_region
      _
    $region25: #{net_forward.1} parent=1 // pred_fallthru
      _
    %1285 = vsyncpa [#allocation3], 1

</llo_original>
